<compile_context>
chip_gen: v7x
topology: tpu7x:2x2x1
jax: 0.10.0
libtpu: 0.0.40
codegen_flags: <defaults>
</compile_context>

<pallas_src>
import jax
import jax.numpy as jnp
import numpy as np
from jax import lax
from jax.experimental import pallas as pl
from jax.experimental.pallas import tpu as pltpu


def _round_up(x, m):
    return ((x + m - 1) // m) * m


def _nbytes(shape, dtype):
    return int(np.prod(shape)) * jnp.dtype(dtype).itemsize


def biresnet_forward(v_emb, q_emb, att_p, wv, bv, wq, bq, wp, bp,
                     *, batch_block=32, compute_dtype=jnp.bfloat16,
                     resident_weights=None):
    """Pallas TPU implementation of BiResNet.forward.

    Shapes:
      v_emb (B, V, VD), q_emb (B, Q, QD), att_p (B, G, V, Q)
      wv (G, VD, H), bv (G, 1, H), wq (G, QD, H), bq (G, 1, H)
      wp (G, QD, QD), bp (G, 1, QD)     with H == QD (BCNet(v_dim, q_dim, q_dim, None, k=1))
    Returns: (B, QD) float32
    """
    B, V, VD = v_emb.shape
    _, Q, QD = q_emb.shape
    G = att_p.shape[1]
    H = wv.shape[-1]
    assert H == QD and wq.shape == (G, QD, H) and wp.shape == (G, QD, QD)
    assert att_p.shape == (B, G, V, Q)

    cd = jnp.dtype(compute_dtype)
    f32 = jnp.float32

    # Pre-transpose attention to (B, G, Q, V): the in-kernel contraction is then a
    # plain batched matmul (contract att's last dim with v_h's V dim).
    att_t = jnp.swapaxes(att_p, 2, 3)

    # Coalesce the three tiny bias vectors into one (G, 3, H) array -> one DMA/step.
    b_all = jnp.concatenate([bv, bq, bp], axis=1).astype(f32)          # (G, 3, H)

    # bf16 feeding of the MXU (default): halves DMA bytes for the large operands.
    # q_emb (which seeds the f32 accumulator) and biases stay f32; all dot
    # accumulation and elementwise math stays f32 inside the kernel.
    if cd != jnp.dtype(jnp.float32):
        v_emb = v_emb.astype(cd)
        att_t = att_t.astype(cd)
        wv = wv.astype(cd)
        wq = wq.astype(cd)
        wp = wp.astype(cd)
    q_emb = q_emb.astype(f32)

    # ---- batch tiling (TB rows per grid step) ----------------------------------
    batch_block = max(8, _round_up(int(batch_block), 8))
    if B <= 8:
        TB = B                                   # single full-batch tile (block == full dim)
    elif B <= batch_block:
        TB = _round_up((B + 1) // 2, 8)          # >=2 tiles so v7x's 2nd TensorCore has work
    else:
        TB = batch_block
    Bp = _round_up(B, TB)
    n_bt = Bp // TB

    # ---- pad V / Q to sublane multiples so in-kernel reshapes are layout no-ops ----
    Vp = _round_up(V, 8)
    Qp = _round_up(Q, 8)
    if (Bp, Vp) != (B, V):
        v_emb = jnp.pad(v_emb, ((0, Bp - B), (0, Vp - V), (0, 0)))
    if (Bp, Qp) != (B, Q):
        q_emb = jnp.pad(q_emb, ((0, Bp - B), (0, Qp - Q), (0, 0)))
    if (Bp, Qp, Vp) != (B, Q, V):
        att_t = jnp.pad(att_t, ((0, Bp - B), (0, 0), (0, Qp - Q), (0, Vp - V)))

    # ---- resident-weights decision (v5e/v6e: big VMEM -> DMA weights once) ---------
    w_bytes = (_nbytes(wv.shape, wv.dtype) + _nbytes(wq.shape, wq.dtype)
               + _nbytes(wp.shape, wp.dtype) + _nbytes(b_all.shape, b_all.dtype))
    if resident_weights is None:
        resident_weights = (n_bt > 1) and (w_bytes <= (16 << 20))

    # ---- VMEM budget: set the scoped limit explicitly from the real working set ----
    act_tile = (_nbytes((TB, Vp, VD), v_emb.dtype) + _nbytes((TB, Qp, QD), q_emb.dtype)
                + _nbytes((TB, Qp, Vp), att_t.dtype))
    w_tile = w_bytes if resident_weights else (w_bytes // G)
    scratch_bytes = _nbytes((TB, Qp, QD), f32)
    inter_bytes = (_nbytes((TB, Vp, H), cd) + 2 * _nbytes((TB, Qp, H), f32)
                   + _nbytes((TB, Qp, H), f32))
    out_tile = _nbytes((TB, QD), f32)
    vmem_est = 2 * (act_tile + w_tile + out_tile) + scratch_bytes + inter_bytes
    try:
        vmem_cap = int(pltpu.get_tpu_info().vmem_capacity_bytes)
    except Exception:
        vmem_cap = 64 << 20                      # v7x (smallest VMEM of the fleet)
    vmem_limit = int(min(max(2 * vmem_est + (4 << 20), 32 << 20), vmem_cap - (2 << 20)))

    def kernel(v_ref, q_ref, att_ref, wv_ref, wq_ref, wp_ref, b_ref, out_ref, q_acc):
        g = pl.program_id(1)

        if resident_weights:
            wv_t = wv_ref[g]                     # (VD, H)  compute dtype
            wq_t = wq_ref[g]                     # (QD, H)
            wp_t = wp_ref[g]                     # (QD, QD)
            bias = b_ref[g]                      # (3, H)   f32
        else:
            wv_t = wv_ref[...]
            wq_t = wq_ref[...]
            wp_t = wp_ref[...]
            bias = b_ref[...]
        bv_b = bias[0:1, :]
        bq_b = bias[1:2, :]
        bp_b = bias[2:3, :]

        # Initialize the carried q_emb accumulator on the first glimpse.
        @pl.when(g == 0)
        def _():
            q_acc[...] = q_ref[...].astype(f32)

        q_cur = q_acc[...]                                           # (TB, Qp, QD) f32

        # --- BCNet.v_net / q_net: fused batch matmuls on the MXU, f32 accumulation.
        v2 = v_ref[...].reshape(TB * Vp, VD)                         # layout no-op (Vp % 8 == 0)
        v_h = jnp.maximum(jnp.dot(v2, wv_t, preferred_element_type=f32) + bv_b, 0.0)
        v_h = v_h.astype(cd).reshape(TB, Vp, H)                      # only consumed by the MXU

        q2 = q_cur.reshape(TB * Qp, QD).astype(cd)                   # layout no-op (Qp % 8 == 0)
        q_h = jnp.maximum(jnp.dot(q2, wq_t, preferred_element_type=f32) + bq_b, 0.0)
        q_h = q_h.reshape(TB, Qp, H)                                 # f32 (elementwise consumer)

        # --- forward_with_weights (k=1):
        #     b[b,d] = sum_{i,j} v_h[b,i,d] * att[b,i,j] * q_h[b,j,d]
        #     att pre-transposed to (TB, Qp, Vp): plain batched matmul, no transpose.
        #     Padded V/Q positions of att are zero, so padding cannot leak into b_emb.
        m = jnp.einsum('bqv,bvh->bqh', att_ref[...], v_h,
                       preferred_element_type=f32)                   # (TB, Qp, H) f32
        b_emb = jnp.sum(m * q_h, axis=1)                             # (TB, H)  f32

        # --- q_prj (FCNet([q_dim, q_dim], act='')) + residual broadcast over Q ---
        p = jnp.dot(b_emb.astype(cd), wp_t, preferred_element_type=f32) + bp_b
        q_acc[...] = q_cur + p[:, None, :]

        # Final store: masked sum over the real Q rows, lane/sublane-dense (TB, QD).
        @pl.when(g == pl.num_programs(1) - 1)
        def _():
            q_all = q_acc[...]
            if Qp != Q:
                qmask = lax.broadcasted_iota(jnp.int32, (1, Qp, 1), 1) < Q
                q_all = jnp.where(qmask, q_all, 0.0)
            out_ref[...] = jnp.sum(q_all, axis=1).astype(out_ref.dtype)

    # Per-glimpse weight specs (double-buffered prefetch across g) or fully resident
    # (constant index_map -> single DMA for the whole kernel).
    # TODO(synk): if VMEM is still tight on v7x at production sizes, single-buffer the
    # resident weight specs via pipeline_mode=pl.Buffered(1).
    if resident_weights:
        w_specs = [
            pl.BlockSpec((G, VD, H), lambda bt, g: (0, 0, 0)),
            pl.BlockSpec((G, QD, H), lambda bt, g: (0, 0, 0)),
            pl.BlockSpec((G, QD, QD), lambda bt, g: (0, 0, 0)),
            pl.BlockSpec((G, 3, H), lambda bt, g: (0, 0, 0)),
        ]
    else:
        w_specs = [
            pl.BlockSpec((None, VD, H), lambda bt, g: (g, 0, 0)),
            pl.BlockSpec((None, QD, H), lambda bt, g: (g, 0, 0)),
            pl.BlockSpec((None, QD, QD), lambda bt, g: (g, 0, 0)),
            pl.BlockSpec((None, 3, H), lambda bt, g: (g, 0, 0)),
        ]

    # Advisory cost estimate for XLA's scheduler (uses actual post-cast itemsizes).
    flops = 2 * Bp * G * (Vp * VD * H + Qp * QD * H + Qp * Vp * H + QD * QD)
    w_reads = 1 if resident_weights else n_bt
    bytes_accessed = (_nbytes(v_emb.shape, v_emb.dtype)
                      + _nbytes(q_emb.shape, q_emb.dtype)
                      + _nbytes(att_t.shape, att_t.dtype)
                      + _nbytes((Bp, QD), f32)
                      + w_reads * w_bytes)
    cost = pl.CostEstimate(flops=int(flops), transcendentals=0,
                           bytes_accessed=int(bytes_accessed))

    out = pl.pallas_call(
        kernel,
        out_shape=jax.ShapeDtypeStruct((Bp, QD), jnp.float32),
        grid_spec=pltpu.PrefetchScalarGridSpec(
            num_scalar_prefetch=0,
            grid=(n_bt, G),
            in_specs=[
                # activations: block index constant across g -> DMA'd once per batch tile
                pl.BlockSpec((TB, Vp, VD), lambda bt, g: (bt, 0, 0)),
                pl.BlockSpec((TB, Qp, QD), lambda bt, g: (bt, 0, 0)),
                pl.BlockSpec((TB, None, Qp, Vp), lambda bt, g: (bt, g, 0, 0)),
                *w_specs,
            ],
            out_specs=pl.BlockSpec((TB, QD), lambda bt, g: (bt, 0)),
            scratch_shapes=[pltpu.VMEM((TB, Qp, QD), jnp.float32)],  # carried q_emb
        ),
        compiler_params=pltpu.CompilerParams(
            dimension_semantics=("parallel", "arbitrary"),
            vmem_limit_bytes=vmem_limit),
        cost_estimate=cost,
    )(v_emb, q_emb, att_t, wv, wq, wp, b_all)

    return out[:B] if Bp != B else out


def biresnet_reference(v_emb, q_emb, att_p, wv, bv, wq, bq, wp, bp):
    """Plain-JAX reference mirroring the PyTorch forward (eval mode)."""
    q_cur = q_emb.astype(jnp.float32)
    G = att_p.shape[1]
    for g in range(G):
        v_h = jax.nn.relu(v_emb @ wv[g] + bv[g])               # (B, V, H)
        q_h = jax.nn.relu(q_cur @ wq[g] + bq[g])               # (B, Q, H)
        att = att_p[:, g]                                      # (B, V, Q)
        m = jnp.einsum('bvq,bvh->bqh', att, v_h)               # (B, Q, H)
        b_emb = jnp.sum(m * q_h, axis=1)                       # (B, H)
        p = b_emb @ wp[g] + bp[g]                              # (B, QD)
        q_cur = q_cur + p[:, None, :]
    return q_cur.sum(axis=1)


def _make_inputs(key, B, G, V, Q, VD, QD):
    H = QD
    ks = jax.random.split(key, 9)
    v_emb = jax.random.normal(ks[0], (B, V, VD), jnp.float32)
    q_emb = jax.random.normal(ks[1], (B, Q, QD), jnp.float32)
    att_p = jax.nn.softmax(jax.random.normal(ks[2], (B, G, V, Q), jnp.float32), axis=-1)
    wv = 0.1 * jax.random.normal(ks[3], (G, VD, H), jnp.float32)
    bv = 0.1 * jax.random.normal(ks[4], (G, 1, H), jnp.float32)
    wq = 0.1 * jax.random.normal(ks[5], (G, QD, H), jnp.float32)
    bq = 0.1 * jax.random.normal(ks[6], (G, 1, H), jnp.float32)
    wp = 0.1 * jax.random.normal(ks[7], (G, QD, QD), jnp.float32)
    bp = 0.1 * jax.random.normal(ks[8], (G, 1, QD), jnp.float32)
    return v_emb, q_emb, att_p, wv, bv, wq, bq, wp, bp


if __name__ == "__main__":
    key = jax.random.PRNGKey(0)
    k1, k2 = jax.random.split(key)

    # ---- Test 1: small shapes consistent with the module (single batch tile) -------
    B, G, V, Q, VD, QD = 2, 2, 16, 8, 32, 32
    args1 = _make_inputs(k1, B, G, V, Q, VD, QD)
    ref1 = biresnet_reference(*args1)

    # f32-input path (default MXU precision) at small contraction sizes.
    out_f32 = biresnet_forward(*args1, compute_dtype=jnp.float32)
    jax.block_until_ready(out_f32)
    assert out_f32.shape == (B, QD)
    assert np.allclose(np.asarray(out_f32), np.asarray(ref1), rtol=1e-4, atol=1e-4), \
        f"f32 mismatch: max abs err {np.max(np.abs(np.asarray(out_f32) - np.asarray(ref1)))}"

    # Default (bf16 MXU inputs, f32 accumulation).
    out_bf = biresnet_forward(*args1)
    jax.block_until_ready(out_bf)
    rel1 = (np.max(np.abs(np.asarray(out_bf) - np.asarray(ref1)))
            / max(np.max(np.abs(np.asarray(ref1))), 1e-6))
    assert rel1 < 5e-2, f"bf16 mismatch (test 1): normalized max err {rel1}"

    # ---- Test 2: exercises batch tiling (2 tiles), V/Q padding (36->40, 14->16),
    # batch padding (20->32) and the fully-resident weights path. ---------------------
    B2, G2, V2, Q2, VD2, QD2 = 20, 3, 36, 14, 48, 32
    args2 = _make_inputs(k2, B2, G2, V2, Q2, VD2, QD2)
    ref2 = biresnet_reference(*args2)

    out2 = biresnet_forward(*args2, batch_block=32)
    jax.block_until_ready(out2)
    assert out2.shape == (B2, QD2)
    rel2 = (np.max(np.abs(np.asarray(out2) - np.asarray(ref2)))
            / max(np.max(np.abs(np.asarray(ref2))), 1e-6))
    assert rel2 < 5e-2, f"bf16 mismatch (test 2): normalized max err {rel2}"

    print("KERNEL_OK")
</pallas_src>

<mosaic_0001>
module attributes {stable_mosaic.version = 11 : i64} {
  func.func @kernel(%arg0: i32, %arg1: i32, %arg2: memref<2x16x32xf32, #tpu.memory_space<vmem>>, %arg3: memref<2x8x32xf32, #tpu.memory_space<vmem>>, %arg4: memref<2x1x8x16xf32, #tpu.memory_space<vmem>>, %arg5: memref<1x32x32xf32, #tpu.memory_space<vmem>>, %arg6: memref<1x32x32xf32, #tpu.memory_space<vmem>>, %arg7: memref<1x32x32xf32, #tpu.memory_space<vmem>>, %arg8: memref<1x3x32xf32, #tpu.memory_space<vmem>>, %arg9: memref<2x32xf32, #tpu.memory_space<vmem>>, %arg10: memref<2x8x32xf32, #tpu.memory_space<vmem>>) attributes {dimension_semantics = [#tpu.dimension_semantics<parallel>, #tpu.dimension_semantics<arbitrary>], iteration_bounds = array<i64: 1, 2>, scalar_prefetch = 0 : i64, scratch_operands = 1 : i64, tpu.core_type = #tpu.core_type<tc>, window_params = [{transform_indices = @transform_0, window_bounds = array<i64: 2, 16, 32>}, {transform_indices = @transform_1, window_bounds = array<i64: 2, 8, 32>}, {transform_indices = @transform_2, window_bounds = array<i64: 2, 1, 8, 16>}, {transform_indices = @transform_3, window_bounds = array<i64: 1, 32, 32>}, {transform_indices = @transform_4, window_bounds = array<i64: 1, 32, 32>}, {transform_indices = @transform_5, window_bounds = array<i64: 1, 32, 32>}, {transform_indices = @transform_6, window_bounds = array<i64: 1, 3, 32>}, {transform_indices = @transform_7, window_bounds = array<i64: 2, 32>}]} {
    %c0 = arith.constant 0 : index
    %c0_0 = arith.constant 0 : index
    %c0_1 = arith.constant 0 : index
    %0 = vector.load %arg5[%c0, %c0_0, %c0_1] : memref<1x32x32xf32, #tpu.memory_space<vmem>>, vector<1x32x32xf32>
    %1 = vector.shape_cast %0 : vector<1x32x32xf32> to vector<32x32xf32>
    %c0_2 = arith.constant 0 : index
    %c0_3 = arith.constant 0 : index
    %c0_4 = arith.constant 0 : index
    %2 = vector.load %arg6[%c0_2, %c0_3, %c0_4] : memref<1x32x32xf32, #tpu.memory_space<vmem>>, vector<1x32x32xf32>
    %3 = vector.shape_cast %2 : vector<1x32x32xf32> to vector<32x32xf32>
    %c0_5 = arith.constant 0 : index
    %c0_6 = arith.constant 0 : index
    %c0_7 = arith.constant 0 : index
    %4 = vector.load %arg7[%c0_5, %c0_6, %c0_7] : memref<1x32x32xf32, #tpu.memory_space<vmem>>, vector<1x32x32xf32>
    %5 = vector.shape_cast %4 : vector<1x32x32xf32> to vector<32x32xf32>
    %c0_8 = arith.constant 0 : index
    %c0_9 = arith.constant 0 : index
    %c0_10 = arith.constant 0 : index
    %6 = vector.load %arg8[%c0_8, %c0_9, %c0_10] : memref<1x3x32xf32, #tpu.memory_space<vmem>>, vector<1x3x32xf32>
    %7 = vector.shape_cast %6 : vector<1x3x32xf32> to vector<3x32xf32>
    %8 = vector.extract_strided_slice %7 {offsets = [0, 0], sizes = [1, 32], strides = [1, 1]} : vector<3x32xf32> to vector<1x32xf32>
    %9 = vector.extract_strided_slice %7 {offsets = [1, 0], sizes = [1, 32], strides = [1, 1]} : vector<3x32xf32> to vector<1x32xf32>
    %10 = vector.extract_strided_slice %7 {offsets = [2, 0], sizes = [1, 32], strides = [1, 1]} : vector<3x32xf32> to vector<1x32xf32>
    %c0_i32 = arith.constant 0 : i32
    %11 = arith.cmpi eq, %arg1, %c0_i32 : i32
    %12 = arith.extui %11 : i1 to i32
    %c0_i32_11 = arith.constant 0 : i32
    %13 = arith.cmpi ne, %12, %c0_i32_11 : i32
    scf.if %13 {
      %c0_32 = arith.constant 0 : index
      %c0_33 = arith.constant 0 : index
      %c0_34 = arith.constant 0 : index
      %45 = vector.load %arg3[%c0_32, %c0_33, %c0_34] : memref<2x8x32xf32, #tpu.memory_space<vmem>>, vector<2x8x32xf32>
      %c0_35 = arith.constant 0 : index
      %c0_36 = arith.constant 0 : index
      %c0_37 = arith.constant 0 : index
      %46 = vector.load %arg10[%c0_35, %c0_36, %c0_37] : memref<2x8x32xf32, #tpu.memory_space<vmem>>, vector<2x8x32xf32>
      tpu.vector_store %arg10[%c0_35, %c0_36, %c0_37], %45 {strides = array<i32>} : memref<2x8x32xf32, #tpu.memory_space<vmem>>, vector<2x8x32xf32>,
    } else {
    }
    %c0_12 = arith.constant 0 : index
    %c0_13 = arith.constant 0 : index
    %c0_14 = arith.constant 0 : index
    %14 = vector.load %arg10[%c0_12, %c0_13, %c0_14] : memref<2x8x32xf32, #tpu.memory_space<vmem>>, vector<2x8x32xf32>
    %c0_15 = arith.constant 0 : index
    %c0_16 = arith.constant 0 : index
    %c0_17 = arith.constant 0 : index
    %15 = vector.load %arg2[%c0_15, %c0_16, %c0_17] : memref<2x16x32xf32, #tpu.memory_space<vmem>>, vector<2x16x32xf32>
    %16 = vector.shape_cast %15 : vector<2x16x32xf32> to vector<32x32xf32>
    %cst = arith.constant dense<0.000000e+00> : vector<32x32xf32>
    %17 = tpu.matmul %16, %1, %cst {dimension_numbers = #tpu.dot_dimension_numbers<[1], [0], [0], [1], [0, 0, 1, 1], [], []>} : vector<32x32xf32>, vector<32x32xf32>, vector<32x32xf32> -> vector<32x32xf32>
    %18 = vector.broadcast %8 : vector<1x32xf32> to vector<32x32xf32>
    %19 = arith.addf %17, %18 : vector<32x32xf32>
    %cst_18 = arith.constant 0.000000e+00 : f32
    %20 = vector.broadcast %cst_18 : f32 to vector<32x32xf32>
    %21 = arith.maximumf %19, %20 : vector<32x32xf32>
    %22 = vector.shape_cast %21 : vector<32x32xf32> to vector<2x16x32xf32>
    %23 = vector.shape_cast %14 : vector<2x8x32xf32> to vector<16x32xf32>
    %cst_19 = arith.constant dense<0.000000e+00> : vector<16x32xf32>
    %24 = tpu.matmul %23, %3, %cst_19 {dimension_numbers = #tpu.dot_dimension_numbers<[1], [0], [0], [1], [0, 0, 1, 1], [], []>} : vector<16x32xf32>, vector<32x32xf32>, vector<16x32xf32> -> vector<16x32xf32>
    %25 = vector.broadcast %9 : vector<1x32xf32> to vector<16x32xf32>
    %26 = arith.addf %24, %25 : vector<16x32xf32>
    %cst_20 = arith.constant 0.000000e+00 : f32
    %27 = vector.broadcast %cst_20 : f32 to vector<16x32xf32>
    %28 = arith.maximumf %26, %27 : vector<16x32xf32>
    %29 = vector.shape_cast %28 : vector<16x32xf32> to vector<2x8x32xf32>
    %c0_21 = arith.constant 0 : index
    %c0_22 = arith.constant 0 : index
    %c0_23 = arith.constant 0 : index
    %c0_24 = arith.constant 0 : index
    %30 = vector.load %arg4[%c0_21, %c0_22, %c0_23, %c0_24] : memref<2x1x8x16xf32, #tpu.memory_space<vmem>>, vector<2x1x8x16xf32>
    %31 = vector.shape_cast %30 : vector<2x1x8x16xf32> to vector<2x8x16xf32>
    "tpu.trace_start"() <{level = 10 : i32, message = "bqv,bvh->bqh"}> : () -> ()
    %cst_25 = arith.constant dense<0.000000e+00> : vector<2x8x32xf32>
    %32 = tpu.matmul %31, %22, %cst_25 {dimension_numbers = #tpu.dot_dimension_numbers<[2], [1], [1], [2], [0, 0, 0, 1, 1, 2], [0], [0]>} : vector<2x8x16xf32>, vector<2x16x32xf32>, vector<2x8x32xf32> -> vector<2x8x32xf32>
    "tpu.trace_stop"() : () -> ()
    %33 = arith.mulf %32, %29 : vector<2x8x32xf32>
    %cst_26 = arith.constant dense<0.000000e+00> : vector<2x32xf32>
    %34 = vector.multi_reduction <add>, %33, %cst_26 [1] : vector<2x8x32xf32> to vector<2x32xf32>
    %cst_27 = arith.constant dense<0.000000e+00> : vector<2x32xf32>
    %35 = tpu.matmul %34, %5, %cst_27 {dimension_numbers = #tpu.dot_dimension_numbers<[1], [0], [0], [1], [0, 0, 1, 1], [], []>} : vector<2x32xf32>, vector<32x32xf32>, vector<2x32xf32> -> vector<2x32xf32>
    %36 = vector.broadcast %10 : vector<1x32xf32> to vector<2x32xf32>
    %37 = arith.addf %35, %36 : vector<2x32xf32>
    %38 = vector.shape_cast %37 : vector<2x32xf32> to vector<2x1x32xf32>
    %39 = vector.broadcast %38 : vector<2x1x32xf32> to vector<2x8x32xf32>
    %40 = arith.addf %14, %39 : vector<2x8x32xf32>
    %c0_28 = arith.constant 0 : index
    %c0_29 = arith.constant 0 : index
    %c0_30 = arith.constant 0 : index
    %41 = vector.load %arg10[%c0_28, %c0_29, %c0_30] : memref<2x8x32xf32, #tpu.memory_space<vmem>>, vector<2x8x32xf32>
    tpu.vector_store %arg10[%c0_28, %c0_29, %c0_30], %40 {strides = array<i32>} : memref<2x8x32xf32, #tpu.memory_space<vmem>>, vector<2x8x32xf32>,
    %c1_i32 = arith.constant 1 : i32
    %42 = arith.cmpi eq, %arg1, %c1_i32 : i32
    %43 = arith.extui %42 : i1 to i32
    %c0_i32_31 = arith.constant 0 : i32
    %44 = arith.cmpi ne, %43, %c0_i32_31 : i32
    scf.if %44 {
      %c0_32 = arith.constant 0 : index
      %c0_33 = arith.constant 0 : index
      %c0_34 = arith.constant 0 : index
      %45 = vector.load %arg10[%c0_32, %c0_33, %c0_34] : memref<2x8x32xf32, #tpu.memory_space<vmem>>, vector<2x8x32xf32>
      %cst_35 = arith.constant dense<0.000000e+00> : vector<2x32xf32>
      %46 = vector.multi_reduction <add>, %45, %cst_35 [1] : vector<2x8x32xf32> to vector<2x32xf32>
      %c0_36 = arith.constant 0 : index
      %c0_37 = arith.constant 0 : index
      %47 = vector.load %arg9[%c0_36, %c0_37] : memref<2x32xf32, #tpu.memory_space<vmem>>, vector<2x32xf32>
      tpu.vector_store %arg9[%c0_36, %c0_37], %46 {strides = array<i32>} : memref<2x32xf32, #tpu.memory_space<vmem>>, vector<2x32xf32>,
    } else {
    }
    return
  }
  func.func @transform_0(%arg0: i32, %arg1: i32) -> (i32, i32, i32) {
    %c0_i32 = arith.constant 0 : i32
    %c0_i32_0 = arith.constant 0 : i32
    %c0_i32_1 = arith.constant 0 : i32
    return %arg0, %c0_i32, %c0_i32_0 : i32, i32, i32
  }
  func.func @transform_1(%arg0: i32, %arg1: i32) -> (i32, i32, i32) {
    %c0_i32 = arith.constant 0 : i32
    %c0_i32_0 = arith.constant 0 : i32
    %c0_i32_1 = arith.constant 0 : i32
    return %arg0, %c0_i32, %c0_i32_0 : i32, i32, i32
  }
  func.func @transform_2(%arg0: i32, %arg1: i32) -> (i32, i32, i32, i32) {
    %c0_i32 = arith.constant 0 : i32
    %c0_i32_0 = arith.constant 0 : i32
    %c0_i32_1 = arith.constant 0 : i32
    return %arg0, %arg1, %c0_i32, %c0_i32_0 : i32, i32, i32, i32
  }
  func.func @transform_3(%arg0: i32, %arg1: i32) -> (i32, i32, i32) {
    %c0_i32 = arith.constant 0 : i32
    %c0_i32_0 = arith.constant 0 : i32
    %c0_i32_1 = arith.constant 0 : i32
    return %arg1, %c0_i32, %c0_i32_0 : i32, i32, i32
  }
  func.func @transform_4(%arg0: i32, %arg1: i32) -> (i32, i32, i32) {
    %c0_i32 = arith.constant 0 : i32
    %c0_i32_0 = arith.constant 0 : i32
    %c0_i32_1 = arith.constant 0 : i32
    return %arg1, %c0_i32, %c0_i32_0 : i32, i32, i32
  }
  func.func @transform_5(%arg0: i32, %arg1: i32) -> (i32, i32, i32) {
    %c0_i32 = arith.constant 0 : i32
    %c0_i32_0 = arith.constant 0 : i32
    %c0_i32_1 = arith.constant 0 : i32
    return %arg1, %c0_i32, %c0_i32_0 : i32, i32, i32
  }
  func.func @transform_6(%arg0: i32, %arg1: i32) -> (i32, i32, i32) {
    %c0_i32 = arith.constant 0 : i32
    %c0_i32_0 = arith.constant 0 : i32
    %c0_i32_1 = arith.constant 0 : i32
    return %arg1, %c0_i32, %c0_i32_0 : i32, i32, i32
  }
  func.func @transform_7(%arg0: i32, %arg1: i32) -> (i32, i32) {
    %c0_i32 = arith.constant 0 : i32
    %c0_i32_0 = arith.constant 0 : i32
    return %arg0, %c0_i32 : i32, i32
  }
}

</mosaic_0001>

<llo_original>
// kernel: tpu_custom_call.1
$region0: #{tpu_custom_call.1}
  #allocation0 [shape = 'u32[]', space=smem, size = 0x4, offset = 0x4, fixed_abs, tag = 'smem constant byte address 0x4 - core index']
  #allocation1 [shape = 'u32[144,128]{1,0:T(1,128)}', space=vmem, size = 0x12000, scoped, tag = 'internal scratch']
  #allocation2 [shape = 'f32[2,8,32]{2,1,0:T(8,128)}', space=vmem, size = 0x2000, scoped, tag = 'scratch operand']
  %s0 = inlined_call_operand.hbm [shape: f32[2,16,32], index: 0, kind: input, shape index: {}]
  %s1 = inlined_call_operand.vmem [shape: f32[2,8,32], index: 1, kind: input, shape index: {}]
  %s2 = inlined_call_operand.hbm [shape: f32[2,2,8,16], index: 2, kind: input, shape index: {}]
  %s3 = inlined_call_operand.hbm [shape: f32[2,32,32], index: 3, kind: input, shape index: {}]
  %s4 = inlined_call_operand.hbm [shape: f32[2,32,32], index: 4, kind: input, shape index: {}]
  %s5 = inlined_call_operand.hbm [shape: f32[2,32,32], index: 5, kind: input, shape index: {}]
  %s6 = inlined_call_operand.vmem [shape: f32[2,3,32], index: 6, kind: input, shape index: {}]
  %s7 = inlined_call_operand.hbm [shape: f32[2,32], index: 7, kind: output, shape index: {}]
  %s8 = sld [smem:[#allocation0]]
  $region89: #{tpu_custom_call.1} parent=0
    _
  %s10 = ssub.s32 1, %s8
  %s11 = scalar_select 0, %s10, %s8
  $region1: #{tpu_custom_call.1} parent=0
    #allocation3 [shape = 'u8[16384]{0}', space=vmem, size = 0x4000, scoped, tag = 'input window, operand 0, single buffered']
    #allocation4 [shape = 's32[2]{0}', space=sflag, size = 0x8, scoped, tag = 'scoped memory for tpu_custom_call.1']
    #allocation5 [shape = 's32[2]{0}', space=sflag, size = 0x8, scoped, tag = 'scoped memory for tpu_custom_call.1']
    #allocation6 [shape = 'u8[16384]{0}', space=vmem, size = 0x4000, scoped, tag = 'input window, operand 2']
    #allocation7 [shape = 's32[2]{0}', space=sflag, size = 0x8, scoped, tag = 'scoped memory for tpu_custom_call.1']
    #allocation8 [shape = 'u8[32768]{0}', space=vmem, size = 0x8000, scoped, tag = 'input window, operand 3']
    #allocation9 [shape = 'u8[32768]{0}', space=vmem, size = 0x8000, scoped, tag = 'input window, operand 4']
    #allocation10 [shape = 's32[2]{0}', space=sflag, size = 0x8, scoped, tag = 'scoped memory for tpu_custom_call.1']
    #allocation11 [shape = 'u8[32768]{0}', space=vmem, size = 0x8000, scoped, tag = 'input window, operand 5']
    #allocation12 [shape = 'u8[1024]{0}', space=vmem, size = 0x400, scoped, tag = 'output window, operand 0, single buffered']
    %12 = vsyncpa [#allocation4], 0
    %13 = vsyncpa [#allocation7], 0
    %s14 = scalar_lea.sflag [#allocation7], 1
    %15 = vsyncpa %s14, 0
    %16 = vsyncpa [#allocation10], 0
    %s17 = scalar_lea.sflag [#allocation10], 1
    %18 = vsyncpa %s17, 0
    %19 = vsyncpa [#allocation5], 0
    loop: start=0, step=1, limit=4
    $region2: #{tpu_custom_call.1} parent=1 // loop_pre_header
      _
    $region3: #{tpu_custom_call.1} parent=1 // loop_header
      %s21 = sphi 0, %s25
      %p22 = scmp.ge.s32.totalorder %s21, 4
      %s28 = sphi 0, %s40
      %s29 = sphi 0, %s36
      %s30 = sphi 0, %s28
      %s31 = sphi 0, %s29
      %s32 = sphi 0, %s30
      %s33 = sphi 0, %s31
      %s43 = sphi 0, %s45
      %s46 = sphi 0, %s43
      %s47 = sphi 0, %s46
      %s63 = sphi 0, %s47
      %s69 = sphi 0, %s71
      %s72 = sphi 0, %s69
      %s73 = sphi 0, %s72
      %s89 = sphi 0, %s73
      %s97 = sphi 0, %s99
      %s100 = sphi 0, %s97
      %s101 = sphi 0, %s100
      %s117 = sphi 0, %s101
      %s123 = sphi 0, %s125
      %s126 = sphi 0, %s123
      %s127 = sphi 0, %s126
      %s143 = sphi 0, %s127
      %s149 = sphi 0, %s151
      %s152 = sphi 0, %s149
      %s153 = sphi 0, %s152
      %s169 = sphi 0, %s153
      %s175 = sphi 0, %s177
      %s178 = sphi 0, %s175
      %s179 = sphi 0, %s178
      %s195 = sphi 0, %s179
      %s201 = sphi 0, %s203
      %s204 = sphi 0, %s201
      %s205 = sphi 0, %s204
      %s221 = sphi 0, %s205
      %s227 = sphi 0, %s229
      %s230 = sphi 0, %s227
      %s231 = sphi 0, %s230
      %s247 = sphi 0, %s231
    $region4: #{tpu_custom_call.1} parent=1 // loop_header_branch
      %24 = sbr.rel (%p22) target = $region8
    $region5: #{tpu_custom_call.1} parent=1 // loop_body
      %s26 = ssub.s32 %s21, 1
      %s27 = ssub.s32 %s21, 2
      %s34 = sadd.s32 1, %s29
      %p35 = scmp.ge.s32.totalorder %s34, 2
      %s36 = scalar_select %p35, 0, %s34
      %s37 = sadd.s32 1, %s28
      %s38 = scalar_select %p35, %s37, %s28
      %p39 = scmp.ge.s32.totalorder %s38, 1
      %s40 = scalar_select %p39, 0, %s38
      %s41 = ssub.s32 %s28, %s40
      %p42 = scmp.eq.s32.totalorder %s41, 0
      %s44 = sadd.s32 %s43, 1
      %s45 = scalar_select %p42, %s43, %s44
      %p48 = pneg %p42
      %p49 = scmp.eq.s32.totalorder %s21, 1
      %p50 = por %p48, %p49
      %p51 = scmp.ne.s32.totalorder %s43, %s46
      %p52 = scmp.eq.s32.totalorder %s21, 0
      %p53 = por %p51, %p52
      %p54 = scmp.ne.s32.totalorder %s43, %s46
      %p55 = scmp.eq.s32.totalorder %s26, 1
      %p56 = por %p54, %p55
      %p57 = scmp.ne.s32.totalorder %s46, %s47
      %p58 = scmp.eq.s32.totalorder %s26, 0
      %p59 = por %p57, %p58
      %p60 = scmp.ne.s32.totalorder %s46, %s47
      %p61 = scmp.eq.s32.totalorder %s27, 1
      %p62 = por %p60, %p61
      %p64 = scmp.ne.s32.totalorder %s47, %s63
      %p65 = scmp.eq.s32.totalorder %s27, 0
      %p66 = por %p64, %p65
      %s67 = ssub.s32 %s28, %s40
      %p68 = scmp.eq.s32.totalorder %s67, 0
      %s70 = sadd.s32 %s69, 1
      %s71 = scalar_select %p68, %s69, %s70
      %p74 = pneg %p68
      %p75 = scmp.eq.s32.totalorder %s21, 1
      %p76 = por %p74, %p75
      %p77 = scmp.ne.s32.totalorder %s69, %s72
      %p78 = scmp.eq.s32.totalorder %s21, 0
      %p79 = por %p77, %p78
      %p80 = scmp.ne.s32.totalorder %s69, %s72
      %p81 = scmp.eq.s32.totalorder %s26, 1
      %p82 = por %p80, %p81
      %p83 = scmp.ne.s32.totalorder %s72, %s73
      %p84 = scmp.eq.s32.totalorder %s26, 0
      %p85 = por %p83, %p84
      %p86 = scmp.ne.s32.totalorder %s72, %s73
      %p87 = scmp.eq.s32.totalorder %s27, 1
      %p88 = por %p86, %p87
      %p90 = scmp.ne.s32.totalorder %s73, %s89
      %p91 = scmp.eq.s32.totalorder %s27, 0
      %p92 = por %p90, %p91
      %s93 = ssub.s32 %s28, %s40
      %s94 = ssub.s32 %s29, %s36
      %s95 = sor.u32 %s93, %s94
      %p96 = scmp.eq.s32.totalorder %s95, 0
      %s98 = sadd.s32 %s97, 1
      %s99 = scalar_select %p96, %s97, %s98
      %p102 = pneg %p96
      %p103 = scmp.eq.s32.totalorder %s21, 1
      %p104 = por %p102, %p103
      %p105 = scmp.ne.s32.totalorder %s97, %s100
      %p106 = scmp.eq.s32.totalorder %s21, 0
      %p107 = por %p105, %p106
      %p108 = scmp.ne.s32.totalorder %s97, %s100
      %p109 = scmp.eq.s32.totalorder %s26, 1
      %p110 = por %p108, %p109
      %p111 = scmp.ne.s32.totalorder %s100, %s101
      %p112 = scmp.eq.s32.totalorder %s26, 0
      %p113 = por %p111, %p112
      %p114 = scmp.ne.s32.totalorder %s100, %s101
      %p115 = scmp.eq.s32.totalorder %s27, 1
      %p116 = por %p114, %p115
      %p118 = scmp.ne.s32.totalorder %s101, %s117
      %p119 = scmp.eq.s32.totalorder %s27, 0
      %p120 = por %p118, %p119
      %s121 = ssub.s32 %s29, %s36
      %p122 = scmp.eq.s32.totalorder %s121, 0
      %s124 = sadd.s32 %s123, 1
      %s125 = scalar_select %p122, %s123, %s124
      %p128 = pneg %p122
      %p129 = scmp.eq.s32.totalorder %s21, 1
      %p130 = por %p128, %p129
      %p131 = scmp.ne.s32.totalorder %s123, %s126
      %p132 = scmp.eq.s32.totalorder %s21, 0
      %p133 = por %p131, %p132
      %p134 = scmp.ne.s32.totalorder %s123, %s126
      %p135 = scmp.eq.s32.totalorder %s26, 1
      %p136 = por %p134, %p135
      %p137 = scmp.ne.s32.totalorder %s126, %s127
      %p138 = scmp.eq.s32.totalorder %s26, 0
      %p139 = por %p137, %p138
      %p140 = scmp.ne.s32.totalorder %s126, %s127
      %p141 = scmp.eq.s32.totalorder %s27, 1
      %p142 = por %p140, %p141
      %p144 = scmp.ne.s32.totalorder %s127, %s143
      %p145 = scmp.eq.s32.totalorder %s27, 0
      %p146 = por %p144, %p145
      %s147 = ssub.s32 %s29, %s36
      %p148 = scmp.eq.s32.totalorder %s147, 0
      %s150 = sadd.s32 %s149, 1
      %s151 = scalar_select %p148, %s149, %s150
      %p154 = pneg %p148
      %p155 = scmp.eq.s32.totalorder %s21, 1
      %p156 = por %p154, %p155
      %p157 = scmp.ne.s32.totalorder %s149, %s152
      %p158 = scmp.eq.s32.totalorder %s21, 0
      %p159 = por %p157, %p158
      %p160 = scmp.ne.s32.totalorder %s149, %s152
      %p161 = scmp.eq.s32.totalorder %s26, 1
      %p162 = por %p160, %p161
      %p163 = scmp.ne.s32.totalorder %s152, %s153
      %p164 = scmp.eq.s32.totalorder %s26, 0
      %p165 = por %p163, %p164
      %p166 = scmp.ne.s32.totalorder %s152, %s153
      %p167 = scmp.eq.s32.totalorder %s27, 1
      %p168 = por %p166, %p167
      %p170 = scmp.ne.s32.totalorder %s153, %s169
      %p171 = scmp.eq.s32.totalorder %s27, 0
      %p172 = por %p170, %p171
      %s173 = ssub.s32 %s29, %s36
      %p174 = scmp.eq.s32.totalorder %s173, 0
      %s176 = sadd.s32 %s175, 1
      %s177 = scalar_select %p174, %s175, %s176
      %p180 = pneg %p174
      %p181 = scmp.eq.s32.totalorder %s21, 1
      %p182 = por %p180, %p181
      %p183 = scmp.ne.s32.totalorder %s175, %s178
      %p184 = scmp.eq.s32.totalorder %s21, 0
      %p185 = por %p183, %p184
      %p186 = scmp.ne.s32.totalorder %s175, %s178
      %p187 = scmp.eq.s32.totalorder %s26, 1
      %p188 = por %p186, %p187
      %p189 = scmp.ne.s32.totalorder %s178, %s179
      %p190 = scmp.eq.s32.totalorder %s26, 0
      %p191 = por %p189, %p190
      %p192 = scmp.ne.s32.totalorder %s178, %s179
      %p193 = scmp.eq.s32.totalorder %s27, 1
      %p194 = por %p192, %p193
      %p196 = scmp.ne.s32.totalorder %s179, %s195
      %p197 = scmp.eq.s32.totalorder %s27, 0
      %p198 = por %p196, %p197
      %s199 = ssub.s32 %s29, %s36
      %p200 = scmp.eq.s32.totalorder %s199, 0
      %s202 = sadd.s32 %s201, 1
      %s203 = scalar_select %p200, %s201, %s202
      %p206 = pneg %p200
      %p207 = scmp.eq.s32.totalorder %s21, 1
      %p208 = por %p206, %p207
      %p209 = scmp.ne.s32.totalorder %s201, %s204
      %p210 = scmp.eq.s32.totalorder %s21, 0
      %p211 = por %p209, %p210
      %p212 = scmp.ne.s32.totalorder %s201, %s204
      %p213 = scmp.eq.s32.totalorder %s26, 1
      %p214 = por %p212, %p213
      %p215 = scmp.ne.s32.totalorder %s204, %s205
      %p216 = scmp.eq.s32.totalorder %s26, 0
      %p217 = por %p215, %p216
      %p218 = scmp.ne.s32.totalorder %s204, %s205
      %p219 = scmp.eq.s32.totalorder %s27, 1
      %p220 = por %p218, %p219
      %p222 = scmp.ne.s32.totalorder %s205, %s221
      %p223 = scmp.eq.s32.totalorder %s27, 0
      %p224 = por %p222, %p223
      %s225 = ssub.s32 %s28, %s40
      %p226 = scmp.eq.s32.totalorder %s225, 0
      %s228 = sadd.s32 %s227, 1
      %s229 = scalar_select %p226, %s227, %s228
      %p232 = pneg %p226
      %p233 = scmp.eq.s32.totalorder %s21, 1
      %p234 = por %p232, %p233
      %p235 = scmp.ne.s32.totalorder %s227, %s230
      %p236 = scmp.eq.s32.totalorder %s21, 0
      %p237 = por %p235, %p236
      %p238 = scmp.ne.s32.totalorder %s227, %s230
      %p239 = scmp.eq.s32.totalorder %s26, 1
      %p240 = por %p238, %p239
      %p241 = scmp.ne.s32.totalorder %s230, %s231
      %p242 = scmp.eq.s32.totalorder %s26, 0
      %p243 = por %p241, %p242
      %p244 = scmp.ne.s32.totalorder %s230, %s231
      %p245 = scmp.eq.s32.totalorder %s27, 1
      %p246 = por %p244, %p245
      %p248 = scmp.ne.s32.totalorder %s231, %s247
      %p249 = scmp.eq.s32.totalorder %s27, 0
      %p250 = por %p248, %p249
      %p251 = scmp.le.s32.totalorder 1, %s21
      %p252 = scmp.lt.s32.totalorder %s21, 3
      %p253 = pnand %p251, %p252
      %p254 = pneg %p253
      // Predicated region
      $region9: #{tpu_custom_call.1} parent=5 // pred_check
        _
      $region10: #{tpu_custom_call.1} parent=5 // pred_check_branch
        %256 = sbr.rel (%p253) target = $region12
      $region11: #{tpu_custom_call.1} parent=5 // pred_region
        %s257 = ssub.s32 %s21, 1
        // Predicated region
        $region13: #{tpu_custom_call.1} parent=11 // pred_check
          %p258 = pneg %p59
        $region14: #{tpu_custom_call.1} parent=11 // pred_check_branch
          %260 = sbr.rel (%p258) target = $region16
        $region15: #{tpu_custom_call.1} parent=11 // pred_region
          %s261 = smul.u32 2, %s30
          %s263 = ssub.s32 512, 512
          %264 = vsyncadd [#allocation4], %s263
          %s265 = smul.addr %s261, 2
          %s266 = smul.addr %s265, 128
          %s267 = scalar_lea.hbm %s0, %s266
          %s268 = sshll.u32 [#allocation3], 4
          %s269 = int_to_ptr.vmem [resolvable:$true] %s268
          %274 = dma.hbm_to_vmem [thread:$0]  %s267, 512, %s269, [#allocation4], 128, 128, 8
        $region16: #{tpu_custom_call.1} parent=11 // pred_fallthru
          _
        // Predicated region
        $region17: #{tpu_custom_call.1} parent=11 // pred_check
          %p275 = pneg %p85
        $region18: #{tpu_custom_call.1} parent=11 // pred_check_branch
          %277 = sbr.rel (%p275) target = $region20
        $region19: #{tpu_custom_call.1} parent=11 // pred_region
          %s278 = smul.u32 2, %s30
          %p279 = scmp.lt.s32.totalorder %s278, 1
          %s280 = scalar_select %p279, %s278, 1
          %s281 = smul.addr %s280, 8
          %s282 = scalar_lea.vmem %s1, %s281
          %s283 = smul.u32 2, %s30
        $region20: #{tpu_custom_call.1} parent=11 // pred_fallthru
          _
      $region12: #{tpu_custom_call.1} parent=5 // pred_fallthru
        _
      %p284 = scmp.lt.s32.totalorder %s21, 2
      // Predicated region
      $region21: #{tpu_custom_call.1} parent=5 // pred_check
        %p285 = pneg %p284
      $region22: #{tpu_custom_call.1} parent=5 // pred_check_branch
        %287 = sbr.rel (%p285) target = $region24
      $region23: #{tpu_custom_call.1} parent=5 // pred_region
        // Predicated region
        $region25: #{tpu_custom_call.1} parent=23 // pred_check
          %p288 = pneg %p107
        $region26: #{tpu_custom_call.1} parent=23 // pred_check_branch
          %290 = sbr.rel (%p288) target = $region28
        $region27: #{tpu_custom_call.1} parent=23 // pred_region
          %s291 = sand.u32 %s21, 1
          %s292 = scalar_lea.sflag [#allocation7], %s291
          %s293 = sand.u32 %s97, 1
          %s294 = smul.addr %s293, 16
          %s295 = scalar_lea.vmem [#allocation6], %s294
          %s296 = smul.u32 2, %s28
          %s298 = ssub.s32 256, 256
          %299 = vsyncadd %s292, %s298
          %s300 = smul.addr %s296, 2
          %s301 = sadd.s32 %s29, %s300
          %s302 = smul.addr %s301, 128
          %s303 = scalar_lea.hbm %s2, %s302
          %s304 = sshll.u32 %s295, 4
          %s305 = int_to_ptr.vmem [resolvable:$true] %s304
          %310 = dma.hbm_to_vmem [thread:$0]  %s303, 256, %s305, %s292, 256, 128, 8
        $region28: #{tpu_custom_call.1} parent=23 // pred_fallthru
          _
        // Predicated region
        $region29: #{tpu_custom_call.1} parent=23 // pred_check
          %p311 = pneg %p133
        $region30: #{tpu_custom_call.1} parent=23 // pred_check_branch
          %313 = sbr.rel (%p311) target = $region32
        $region31: #{tpu_custom_call.1} parent=23 // pred_region
          %s314 = sand.u32 %s21, 1
          %s315 = scalar_lea.sflag [#allocation7], %s314
          %s316 = sand.u32 %s123, 1
          %s317 = smul.addr %s316, 32
          %s318 = scalar_lea.vmem [#allocation8], %s317
          %s320 = ssub.s32 512, 512
          %321 = vsyncadd %s315, %s320
          %s322 = smul.addr %s29, 4
          %s323 = smul.addr %s322, 128
          %s324 = scalar_lea.hbm %s3, %s323
          %s325 = sshll.u32 %s318, 4
          %s326 = int_to_ptr.vmem [resolvable:$true] %s325
          %331 = dma.hbm_to_vmem [thread:$0]  %s324, 512, %s326, %s315, 128, 128, 8
        $region32: #{tpu_custom_call.1} parent=23 // pred_fallthru
          _
        // Predicated region
        $region33: #{tpu_custom_call.1} parent=23 // pred_check
          %p332 = pneg %p159
        $region34: #{tpu_custom_call.1} parent=23 // pred_check_branch
          %334 = sbr.rel (%p332) target = $region36
        $region35: #{tpu_custom_call.1} parent=23 // pred_region
          %s335 = sand.u32 %s21, 1
          %s336 = scalar_lea.sflag [#allocation10], %s335
          %s337 = sand.u32 %s149, 1
          %s338 = smul.addr %s337, 32
          %s339 = scalar_lea.vmem [#allocation9], %s338
          %s341 = ssub.s32 512, 512
          %342 = vsyncadd %s336, %s341
          %s343 = smul.addr %s29, 4
          %s344 = smul.addr %s343, 128
          %s345 = scalar_lea.hbm %s4, %s344
          %s346 = sshll.u32 %s339, 4
          %s347 = int_to_ptr.vmem [resolvable:$true] %s346
          %352 = dma.hbm_to_vmem [thread:$0]  %s345, 512, %s347, %s336, 128, 128, 8
        $region36: #{tpu_custom_call.1} parent=23 // pred_fallthru
          _
        // Predicated region
        $region37: #{tpu_custom_call.1} parent=23 // pred_check
          %p353 = pneg %p185
        $region38: #{tpu_custom_call.1} parent=23 // pred_check_branch
          %355 = sbr.rel (%p353) target = $region40
        $region39: #{tpu_custom_call.1} parent=23 // pred_region
          %s356 = sand.u32 %s21, 1
          %s357 = scalar_lea.sflag [#allocation10], %s356
          %s358 = sand.u32 %s175, 1
          %s359 = smul.addr %s358, 32
          %s360 = scalar_lea.vmem [#allocation11], %s359
          %s362 = ssub.s32 512, 512
          %363 = vsyncadd %s357, %s362
          %s364 = smul.addr %s29, 4
          %s365 = smul.addr %s364, 128
          %s366 = scalar_lea.hbm %s5, %s365
          %s367 = sshll.u32 %s360, 4
          %s368 = int_to_ptr.vmem [resolvable:$true] %s367
          %373 = dma.hbm_to_vmem [thread:$0]  %s366, 512, %s368, %s357, 128, 128, 8
        $region40: #{tpu_custom_call.1} parent=23 // pred_fallthru
          _
        // Predicated region
        $region41: #{tpu_custom_call.1} parent=23 // pred_check
          %p374 = pneg %p211
        $region42: #{tpu_custom_call.1} parent=23 // pred_check_branch
          %376 = sbr.rel (%p374) target = $region44
        $region43: #{tpu_custom_call.1} parent=23 // pred_region
          %p377 = scmp.lt.s32.totalorder %s29, 1
          %s378 = scalar_select %p377, %s29, 1
          %s379 = smul.addr %s378, 4
          %s380 = scalar_lea.vmem %s6, %s379
        $region44: #{tpu_custom_call.1} parent=23 // pred_fallthru
          _
      $region24: #{tpu_custom_call.1} parent=5 // pred_fallthru
        _
      %p381 = scmp.le.s32.totalorder 1, %s21
      %p382 = scmp.lt.s32.totalorder %s21, 3
      %p383 = pnand %p381, %p382
      %p384 = pneg %p383
      // Predicated region
      $region45: #{tpu_custom_call.1} parent=5 // pred_check
        _
      $region46: #{tpu_custom_call.1} parent=5 // pred_check_branch
        %386 = sbr.rel (%p383) target = $region48
      $region47: #{tpu_custom_call.1} parent=5 // pred_region
        %s387 = ssub.s32 %s21, 1
        // Predicated region
        $region49: #{tpu_custom_call.1} parent=47 // pred_check
          %p388 = pneg %p59
        $region50: #{tpu_custom_call.1} parent=47 // pred_check_branch
          %390 = sbr.rel (%p388) target = $region52
        $region51: #{tpu_custom_call.1} parent=47 // pred_region
          %391 = dma.done [#allocation4], 512
        $region52: #{tpu_custom_call.1} parent=47 // pred_fallthru
          _
        %s392 = sand.u32 %s26, 1
        %s393 = scalar_lea.sflag [#allocation7], %s392
        %s394 = sand.u32 %s100, 1
        %s395 = smul.addr %s394, 16
        %s396 = scalar_lea.vmem [#allocation6], %s395
        // Predicated region
        $region53: #{tpu_custom_call.1} parent=47 // pred_check
          %p397 = pneg %p113
        $region54: #{tpu_custom_call.1} parent=47 // pred_check_branch
          %399 = sbr.rel (%p397) target = $region56
        $region55: #{tpu_custom_call.1} parent=47 // pred_region
          %400 = dma.done %s393, 256
        $region56: #{tpu_custom_call.1} parent=47 // pred_fallthru
          _
        %s401 = sand.u32 %s26, 1
        %s402 = scalar_lea.sflag [#allocation7], %s401
        %s403 = sand.u32 %s126, 1
        %s404 = smul.addr %s403, 32
        %s405 = scalar_lea.vmem [#allocation8], %s404
        // Predicated region
        $region57: #{tpu_custom_call.1} parent=47 // pred_check
          %p406 = pneg %p139
        $region58: #{tpu_custom_call.1} parent=47 // pred_check_branch
          %408 = sbr.rel (%p406) target = $region60
        $region59: #{tpu_custom_call.1} parent=47 // pred_region
          %409 = dma.done %s402, 512
        $region60: #{tpu_custom_call.1} parent=47 // pred_fallthru
          _
        %s410 = sand.u32 %s26, 1
        %s411 = scalar_lea.sflag [#allocation10], %s410
        %s412 = sand.u32 %s152, 1
        %s413 = smul.addr %s412, 32
        %s414 = scalar_lea.vmem [#allocation9], %s413
        // Predicated region
        $region61: #{tpu_custom_call.1} parent=47 // pred_check
          %p415 = pneg %p165
        $region62: #{tpu_custom_call.1} parent=47 // pred_check_branch
          %417 = sbr.rel (%p415) target = $region64
        $region63: #{tpu_custom_call.1} parent=47 // pred_region
          %418 = dma.done %s411, 512
        $region64: #{tpu_custom_call.1} parent=47 // pred_fallthru
          _
        %s419 = sand.u32 %s26, 1
        %s420 = scalar_lea.sflag [#allocation10], %s419
        %s421 = sand.u32 %s178, 1
        %s422 = smul.addr %s421, 32
        %s423 = scalar_lea.vmem [#allocation11], %s422
        // Predicated region
        $region65: #{tpu_custom_call.1} parent=47 // pred_check
          %p424 = pneg %p191
        $region66: #{tpu_custom_call.1} parent=47 // pred_check_branch
          %426 = sbr.rel (%p424) target = $region68
        $region67: #{tpu_custom_call.1} parent=47 // pred_region
          %427 = dma.done %s420, 512
        $region68: #{tpu_custom_call.1} parent=47 // pred_fallthru
          _
        %p428 = pneg %p59
        %p429 = pneg %p56
        %s430 = smul.u32 2, %s30
        %p431 = scmp.lt.s32.totalorder %s430, 1
        %s432 = scalar_select %p431, %s430, 1
        %s433 = smul.addr %s432, 8
        %s434 = scalar_lea.vmem %s1, %s433
        %p435 = pneg %p85
        %p436 = pneg %p82
        %s437 = sand.u32 %s26, 1
        %s438 = scalar_lea.sflag [#allocation7], %s437
        %s439 = sand.u32 %s100, 1
        %s440 = smul.addr %s439, 16
        %s441 = scalar_lea.vmem [#allocation6], %s440
        %p442 = pneg %p113
        %p443 = pneg %p110
        %s444 = sand.u32 %s26, 1
        %s445 = scalar_lea.sflag [#allocation7], %s444
        %s446 = sand.u32 %s126, 1
        %s447 = smul.addr %s446, 32
        %s448 = scalar_lea.vmem [#allocation8], %s447
        %p449 = pneg %p139
        %p450 = pneg %p136
        %s451 = sand.u32 %s26, 1
        %s452 = scalar_lea.sflag [#allocation10], %s451
        %s453 = sand.u32 %s152, 1
        %s454 = smul.addr %s453, 32
        %s455 = scalar_lea.vmem [#allocation9], %s454
        %p456 = pneg %p165
        %p457 = pneg %p162
        %s458 = sand.u32 %s26, 1
        %s459 = scalar_lea.sflag [#allocation10], %s458
        %s460 = sand.u32 %s178, 1
        %s461 = smul.addr %s460, 32
        %s462 = scalar_lea.vmem [#allocation11], %s461
        %p463 = pneg %p191
        %p464 = pneg %p188
        %p465 = scmp.lt.s32.totalorder %s31, 1
        %s466 = scalar_select %p465, %s31, 1
        %s467 = smul.addr %s466, 4
        %s468 = scalar_lea.vmem %s6, %s467
        %p469 = pneg %p217
        %p470 = pneg %p214
        %p471 = pneg %p243
        %p472 = pneg %p240
        %s473 = smul.u32 2, %s30
        %s474 = smul.u32 2, %s30
        %p475 = scmp.lt.s32.totalorder %s474, 1
        %s476 = scalar_select %p475, %s474, 1
        %s477 = smul.addr %s476, 8
        %s478 = scalar_lea.vmem %s1, %s477
        %s479 = smul.u32 2, %s30
        %s480 = smul.u32 2, %s30
        %p481 = scmp.lt.s32.totalorder %s31, 1
        %s482 = scalar_select %p481, %s31, 1
        %s483 = smul.addr %s482, 4
        %s484 = scalar_lea.vmem %s6, %s483
        %v485 = vld [vmem:[%s405] sm:$0xff]
        %v486 = vld [vmem:[%s405 + $0x8] sm:$0xff]
        %v487 = vld [vmem:[%s405 + $0x10] sm:$0xff]
        %v488 = vld [vmem:[%s405 + $0x18] sm:$0xff]
        %v489 = vld [vmem:[%s414] sm:$0xff]
        %v490 = vld [vmem:[%s414 + $0x8] sm:$0xff]
        %v491 = vld [vmem:[%s414 + $0x10] sm:$0xff]
        %v492 = vld [vmem:[%s414 + $0x18] sm:$0xff]
        %v493 = vld [vmem:[%s423] sm:$0xff]
        %v494 = vld [vmem:[%s423 + $0x8] sm:$0xff]
        %v495 = vld [vmem:[%s423 + $0x10] sm:$0xff]
        %v496 = vld [vmem:[%s423 + $0x18] sm:$0xff]
        %v497 = vld [vmem:[%s484] sm:$0x7]
        %p498 = scmp.eq.s32.totalorder %s31, 0
        // Predicated region
        $region69: #{tpu_custom_call.1} parent=47 // pred_check
          %p499 = pneg %p498
        $region70: #{tpu_custom_call.1} parent=47 // pred_check_branch
          %501 = sbr.rel (%p499) target = $region72
        $region71: #{tpu_custom_call.1} parent=47 // pred_region
          %v502 = vld [vmem:[%s478] sm:$0xff]
          %v503 = vld [vmem:[%s478 + $0x8] sm:$0xff]
          %vm504 = vcmask 261120
          %505 = vst.msk [vmem:[#allocation2] sm:$0xff] %vm504, %v502
          %506 = vst.msk [vmem:[#allocation2 + $0x8] sm:$0xff] %vm504, %v503
        $region72: #{tpu_custom_call.1} parent=47 // pred_fallthru
          _
        %v507 = vld [vmem:[#allocation2] sm:$0xff]
        %v508 = vld [vmem:[#allocation2 + $0x8] sm:$0xff]
        %v509 = vld [vmem:[#allocation3] sm:$0xff]
        %v510 = vld [vmem:[#allocation3 + $0x8] sm:$0xff]
        %v511 = vld [vmem:[#allocation3 + $0x10] sm:$0xff]
        %v512 = vld [vmem:[#allocation3 + $0x18] sm:$0xff]
        %v513 = vlaneseq
        %v514 = vshrl.u32 %v513, 7
        %v515 = vsub.s32 0, %v514
        %v516 = vrot.slane %v497, %v515
        %vm517 = vcmask 261120
        %v519 = vsel %vm517, %v509, 0
        %v522 = vsel %vm517, %v510, 0
        %v525 = vsel %vm517, %v511, 0
        %v528 = vsel %vm517, %v512, 0
        %530 = vmatprep.subr.mxu0 0.0
        %531 = vmatpush1.msra.mxu0 %v485
        %532 = vmatprep.subr.mxu0 0.0
        %533 = vmatpush1.msra.mxu0 %v486
        %534 = vmatprep.subr.mxu0 0.0
        %535 = vmatpush1.msra.mxu0 %v487
        %536 = vmatprep.subr.mxu0 0.0
        %537 = vmatpush1.msra.mxu0 %v488
        %538 = vmatprep.subr.mxu0 0.0
        %539 = vmatpush1.msra.mxu0 0.0
        %540 = vmatprep.subr.mxu0 0.0
        %541 = vmatpush1.msra.mxu0 0.0
        %542 = vmatprep.subr.mxu0 0.0
        %543 = vmatpush1.msra.mxu0 0.0
        %544 = vmatprep.subr.mxu0 0.0
        %545 = vmatpush1.msra.mxu0 0.0
        %546 = vmatprep.subr.mxu0 0.0
        %547 = vmatpush1.msra.mxu0 0.0
        %548 = vmatprep.subr.mxu0 0.0
        %549 = vmatpush1.msra.mxu0 0.0
        %550 = vmatprep.subr.mxu0 0.0
        %551 = vmatpush1.msra.mxu0 0.0
        %552 = vmatprep.subr.mxu0 0.0
        %553 = vmatpush1.msra.mxu0 0.0
        %554 = vmatprep.subr.mxu0 0.0
        %555 = vmatpush1.msra.mxu0 0.0
        %556 = vmatprep.subr.mxu0 0.0
        %557 = vmatpush1.msra.mxu0 0.0
        %558 = vmatprep.subr.mxu0 0.0
        %559 = vmatpush1.msra.mxu0 0.0
        %560 = vmatprep.subr.mxu0 0.0
        %561 = vmatpush1.msra.mxu0 0.0
        %562 = vmatprep.subr.mxu0 0.0
        %563 = vmatpush1.msra.mxu0 0.0
        %564 = vmatprep.subr.mxu0 0.0
        %565 = vmatpush1.msra.mxu0 0.0
        %566 = vmatprep.subr.mxu0 0.0
        %567 = vmatpush1.msra.mxu0 0.0
        %568 = vmatprep.subr.mxu0 0.0
        %569 = vmatpush1.msra.mxu0 0.0
        %570 = vmatprep.subr.mxu0 0.0
        %571 = vmatpush1.msra.mxu0 0.0
        %572 = vmatprep.subr.mxu0 0.0
        %573 = vmatpush1.msra.mxu0 0.0
        %574 = vmatprep.subr.mxu0 0.0
        %575 = vmatpush1.msra.mxu0 0.0
        %576 = vmatprep.subr.mxu0 0.0
        %577 = vmatpush1.msra.mxu0 0.0
        %578 = vmatprep.subr.mxu0 0.0
        %579 = vmatpush1.msra.mxu0 0.0
        %580 = vmatprep.subr.mxu0 0.0
        %581 = vmatpush1.msra.mxu0 0.0
        %582 = vmatprep.subr.mxu0 0.0
        %583 = vmatpush1.msra.mxu0 0.0
        %584 = vmatprep.subr.mxu0 0.0
        %585 = vmatpush1.msra.mxu0 0.0
        %586 = vmatprep.subr.mxu0 0.0
        %587 = vmatpush1.msra.mxu0 0.0
        %588 = vmatprep.subr.mxu0 0.0
        %589 = vmatpush1.msra.mxu0 0.0
        %590 = vmatprep.subr.mxu0 0.0
        %591 = vmatpush1.msra.mxu0 0.0
        %592 = vmatprep.subr.mxu0 0.0
        %593 = vmatpush1.msra.mxu0 0.0
        %594 = vmatprep.mubr.f32.mxu0 0.0
        %595 = vmatmul.mubr.f32.gmra.mrb[0].mxu0 %v519
        %v596 = vpop.f32.mrb[0].mxu0
        %v597 = vadd.f32 %v516, %v596
        %v598 = vpop.f32.mrb[0].mxu0
        %599 = vmatprep.mubr.f32.mxu0 0.0
        %600 = vmatmul.mubr.f32.gmra.mrb[0].mxu0 %v522
        %v601 = vpop.f32.mrb[0].mxu0
        %v602 = vadd.f32 %v516, %v601
        %v603 = vpop.f32.mrb[0].mxu0
        %604 = vmatprep.mubr.f32.mxu0 0.0
        %605 = vmatmul.mubr.f32.gmra.mrb[0].mxu0 %v525
        %v606 = vpop.f32.mrb[0].mxu0
        %v607 = vadd.f32 %v516, %v606
        %v608 = vpop.f32.mrb[0].mxu0
        %609 = vmatprep.mubr.f32.mxu0 0.0
        %610 = vmatmul.mubr.f32.gmra.mrb[0].mxu0 %v528
        %v611 = vpop.f32.mrb[0].mxu0
        %v612 = vadd.f32 %v516, %v611
        %v613 = vpop.f32.mrb[0].mxu0
        %614 = vdwg.mxu0
        %v615 = vmax.f32 %v597, 0.0
        %v616 = vmax.f32 %v602, 0.0
        %v617 = vmax.f32 %v607, 0.0
        %v618 = vmax.f32 %v612, 0.0
        %v619 = vlaneseq
        %v620 = vshrl.u32 %v619, 7
        %v621 = vsub.s32 1, %v620
        %v622 = vrot.slane %v497, %v621
        %v624 = vsel %vm517, %v507, 0
        %v627 = vsel %vm517, %v508, 0
        %629 = vmatprep.subr.mxu0 0.0
        %630 = vmatpush1.msra.mxu0 %v489
        %631 = vmatprep.subr.mxu0 0.0
        %632 = vmatpush1.msra.mxu0 %v490
        %633 = vmatprep.subr.mxu0 0.0
        %634 = vmatpush1.msra.mxu0 %v491
        %635 = vmatprep.subr.mxu0 0.0
        %636 = vmatpush1.msra.mxu0 %v492
        %637 = vmatprep.subr.mxu0 0.0
        %638 = vmatpush1.msra.mxu0 0.0
        %639 = vmatprep.subr.mxu0 0.0
        %640 = vmatpush1.msra.mxu0 0.0
        %641 = vmatprep.subr.mxu0 0.0
        %642 = vmatpush1.msra.mxu0 0.0
        %643 = vmatprep.subr.mxu0 0.0
        %644 = vmatpush1.msra.mxu0 0.0
        %645 = vmatprep.subr.mxu0 0.0
        %646 = vmatpush1.msra.mxu0 0.0
        %647 = vmatprep.subr.mxu0 0.0
        %648 = vmatpush1.msra.mxu0 0.0
        %649 = vmatprep.subr.mxu0 0.0
        %650 = vmatpush1.msra.mxu0 0.0
        %651 = vmatprep.subr.mxu0 0.0
        %652 = vmatpush1.msra.mxu0 0.0
        %653 = vmatprep.subr.mxu0 0.0
        %654 = vmatpush1.msra.mxu0 0.0
        %655 = vmatprep.subr.mxu0 0.0
        %656 = vmatpush1.msra.mxu0 0.0
        %657 = vmatprep.subr.mxu0 0.0
        %658 = vmatpush1.msra.mxu0 0.0
        %659 = vmatprep.subr.mxu0 0.0
        %660 = vmatpush1.msra.mxu0 0.0
        %661 = vmatprep.subr.mxu0 0.0
        %662 = vmatpush1.msra.mxu0 0.0
        %663 = vmatprep.subr.mxu0 0.0
        %664 = vmatpush1.msra.mxu0 0.0
        %665 = vmatprep.subr.mxu0 0.0
        %666 = vmatpush1.msra.mxu0 0.0
        %667 = vmatprep.subr.mxu0 0.0
        %668 = vmatpush1.msra.mxu0 0.0
        %669 = vmatprep.subr.mxu0 0.0
        %670 = vmatpush1.msra.mxu0 0.0
        %671 = vmatprep.subr.mxu0 0.0
        %672 = vmatpush1.msra.mxu0 0.0
        %673 = vmatprep.subr.mxu0 0.0
        %674 = vmatpush1.msra.mxu0 0.0
        %675 = vmatprep.subr.mxu0 0.0
        %676 = vmatpush1.msra.mxu0 0.0
        %677 = vmatprep.subr.mxu0 0.0
        %678 = vmatpush1.msra.mxu0 0.0
        %679 = vmatprep.subr.mxu0 0.0
        %680 = vmatpush1.msra.mxu0 0.0
        %681 = vmatprep.subr.mxu0 0.0
        %682 = vmatpush1.msra.mxu0 0.0
        %683 = vmatprep.subr.mxu0 0.0
        %684 = vmatpush1.msra.mxu0 0.0
        %685 = vmatprep.subr.mxu0 0.0
        %686 = vmatpush1.msra.mxu0 0.0
        %687 = vmatprep.subr.mxu0 0.0
        %688 = vmatpush1.msra.mxu0 0.0
        %689 = vmatprep.subr.mxu0 0.0
        %690 = vmatpush1.msra.mxu0 0.0
        %691 = vmatprep.subr.mxu0 0.0
        %692 = vmatpush1.msra.mxu0 0.0
        %693 = vmatprep.mubr.f32.mxu0 0.0
        %694 = vmatmul.mubr.f32.gmra.mrb[0].mxu0 %v624
        %v695 = vpop.f32.mrb[0].mxu0
        %v696 = vadd.f32 %v622, %v695
        %v697 = vpop.f32.mrb[0].mxu0
        %698 = vmatprep.mubr.f32.mxu0 0.0
        %699 = vmatmul.mubr.f32.gmra.mrb[0].mxu0 %v627
        %v700 = vpop.f32.mrb[0].mxu0
        %v701 = vadd.f32 %v622, %v700
        %v702 = vpop.f32.mrb[0].mxu0
        %703 = vdwg.mxu0
        %v704 = vmax.f32 %v696, 0.0
        %v705 = vmax.f32 %v701, 0.0
        %v706 = vld [vmem:[%s396] sm:$0xff]
        %v707 = vld [vmem:[%s396 + $0x8] sm:$0xff]
        %vm708 = vcmask 130048
        %v710 = vsel %vm708, %v706, 0
        %712 = vmatprep.subr.mxu0 0.0
        %713 = vmatpush1.msra.mxu0 %v615
        %714 = vmatprep.subr.mxu0 0.0
        %715 = vmatpush1.msra.mxu0 %v616
        %716 = vmatprep.subr.mxu0 0.0
        %717 = vmatpush1.msra.mxu0 0.0
        %718 = vmatprep.subr.mxu0 0.0
        %719 = vmatpush1.msra.mxu0 0.0
        %720 = vmatprep.subr.mxu0 0.0
        %721 = vmatpush1.msra.mxu0 0.0
        %722 = vmatprep.subr.mxu0 0.0
        %723 = vmatpush1.msra.mxu0 0.0
        %724 = vmatprep.subr.mxu0 0.0
        %725 = vmatpush1.msra.mxu0 0.0
        %726 = vmatprep.subr.mxu0 0.0
        %727 = vmatpush1.msra.mxu0 0.0
        %728 = vmatprep.subr.mxu0 0.0
        %729 = vmatpush1.msra.mxu0 0.0
        %730 = vmatprep.subr.mxu0 0.0
        %731 = vmatpush1.msra.mxu0 0.0
        %732 = vmatprep.subr.mxu0 0.0
        %733 = vmatpush1.msra.mxu0 0.0
        %734 = vmatprep.subr.mxu0 0.0
        %735 = vmatpush1.msra.mxu0 0.0
        %736 = vmatprep.subr.mxu0 0.0
        %737 = vmatpush1.msra.mxu0 0.0
        %738 = vmatprep.subr.mxu0 0.0
        %739 = vmatpush1.msra.mxu0 0.0
        %740 = vmatprep.subr.mxu0 0.0
        %741 = vmatpush1.msra.mxu0 0.0
        %742 = vmatprep.subr.mxu0 0.0
        %743 = vmatpush1.msra.mxu0 0.0
        %744 = vmatprep.subr.mxu0 0.0
        %745 = vmatpush1.msra.mxu0 0.0
        %746 = vmatprep.subr.mxu0 0.0
        %747 = vmatpush1.msra.mxu0 0.0
        %748 = vmatprep.subr.mxu0 0.0
        %749 = vmatpush1.msra.mxu0 0.0
        %750 = vmatprep.subr.mxu0 0.0
        %751 = vmatpush1.msra.mxu0 0.0
        %752 = vmatprep.subr.mxu0 0.0
        %753 = vmatpush1.msra.mxu0 0.0
        %754 = vmatprep.subr.mxu0 0.0
        %755 = vmatpush1.msra.mxu0 0.0
        %756 = vmatprep.subr.mxu0 0.0
        %757 = vmatpush1.msra.mxu0 0.0
        %758 = vmatprep.subr.mxu0 0.0
        %759 = vmatpush1.msra.mxu0 0.0
        %760 = vmatprep.subr.mxu0 0.0
        %761 = vmatpush1.msra.mxu0 0.0
        %762 = vmatprep.subr.mxu0 0.0
        %763 = vmatpush1.msra.mxu0 0.0
        %764 = vmatprep.subr.mxu0 0.0
        %765 = vmatpush1.msra.mxu0 0.0
        %766 = vmatprep.subr.mxu0 0.0
        %767 = vmatpush1.msra.mxu0 0.0
        %768 = vmatprep.subr.mxu0 0.0
        %769 = vmatpush1.msra.mxu0 0.0
        %770 = vmatprep.subr.mxu0 0.0
        %771 = vmatpush1.msra.mxu0 0.0
        %772 = vmatprep.subr.mxu0 0.0
        %773 = vmatpush1.msra.mxu0 0.0
        %774 = vmatprep.subr.mxu0 0.0
        %775 = vmatpush1.msra.mxu0 0.0
        %776 = vmatprep.mubr.f32.mxu0 0.0
        %777 = vmatmul.mubr.f32.gmra.mrb[0].mxu0 %v710
        %v778 = vpop.f32.mrb[0].mxu0
        %v779 = vadd.f32 0.0, %v778
        %v780 = vpop.f32.mrb[0].mxu0
        %781 = vdwg.mxu0
        %v783 = vsel %vm708, %v707, 0
        %785 = vmatprep.subr.mxu0 0.0
        %786 = vmatpush1.msra.mxu0 %v617
        %787 = vmatprep.subr.mxu0 0.0
        %788 = vmatpush1.msra.mxu0 %v618
        %789 = vmatprep.subr.mxu0 0.0
        %790 = vmatpush1.msra.mxu0 0.0
        %791 = vmatprep.subr.mxu0 0.0
        %792 = vmatpush1.msra.mxu0 0.0
        %793 = vmatprep.subr.mxu0 0.0
        %794 = vmatpush1.msra.mxu0 0.0
        %795 = vmatprep.subr.mxu0 0.0
        %796 = vmatpush1.msra.mxu0 0.0
        %797 = vmatprep.subr.mxu0 0.0
        %798 = vmatpush1.msra.mxu0 0.0
        %799 = vmatprep.subr.mxu0 0.0
        %800 = vmatpush1.msra.mxu0 0.0
        %801 = vmatprep.subr.mxu0 0.0
        %802 = vmatpush1.msra.mxu0 0.0
        %803 = vmatprep.subr.mxu0 0.0
        %804 = vmatpush1.msra.mxu0 0.0
        %805 = vmatprep.subr.mxu0 0.0
        %806 = vmatpush1.msra.mxu0 0.0
        %807 = vmatprep.subr.mxu0 0.0
        %808 = vmatpush1.msra.mxu0 0.0
        %809 = vmatprep.subr.mxu0 0.0
        %810 = vmatpush1.msra.mxu0 0.0
        %811 = vmatprep.subr.mxu0 0.0
        %812 = vmatpush1.msra.mxu0 0.0
        %813 = vmatprep.subr.mxu0 0.0
        %814 = vmatpush1.msra.mxu0 0.0
        %815 = vmatprep.subr.mxu0 0.0
        %816 = vmatpush1.msra.mxu0 0.0
        %817 = vmatprep.subr.mxu0 0.0
        %818 = vmatpush1.msra.mxu0 0.0
        %819 = vmatprep.subr.mxu0 0.0
        %820 = vmatpush1.msra.mxu0 0.0
        %821 = vmatprep.subr.mxu0 0.0
        %822 = vmatpush1.msra.mxu0 0.0
        %823 = vmatprep.subr.mxu0 0.0
        %824 = vmatpush1.msra.mxu0 0.0
        %825 = vmatprep.subr.mxu0 0.0
        %826 = vmatpush1.msra.mxu0 0.0
        %827 = vmatprep.subr.mxu0 0.0
        %828 = vmatpush1.msra.mxu0 0.0
        %829 = vmatprep.subr.mxu0 0.0
        %830 = vmatpush1.msra.mxu0 0.0
        %831 = vmatprep.subr.mxu0 0.0
        %832 = vmatpush1.msra.mxu0 0.0
        %833 = vmatprep.subr.mxu0 0.0
        %834 = vmatpush1.msra.mxu0 0.0
        %835 = vmatprep.subr.mxu0 0.0
        %836 = vmatpush1.msra.mxu0 0.0
        %837 = vmatprep.subr.mxu0 0.0
        %838 = vmatpush1.msra.mxu0 0.0
        %839 = vmatprep.subr.mxu0 0.0
        %840 = vmatpush1.msra.mxu0 0.0
        %841 = vmatprep.subr.mxu0 0.0
        %842 = vmatpush1.msra.mxu0 0.0
        %843 = vmatprep.subr.mxu0 0.0
        %844 = vmatpush1.msra.mxu0 0.0
        %845 = vmatprep.subr.mxu0 0.0
        %846 = vmatpush1.msra.mxu0 0.0
        %847 = vmatprep.subr.mxu0 0.0
        %848 = vmatpush1.msra.mxu0 0.0
        %849 = vmatprep.mubr.f32.mxu0 0.0
        %850 = vmatmul.mubr.f32.gmra.mrb[0].mxu0 %v783
        %v851 = vpop.f32.mrb[0].mxu0
        %v852 = vadd.f32 0.0, %v851
        %v853 = vpop.f32.mrb[0].mxu0
        %854 = vdwg.mxu0
        %v855 = vmul.f32 %v779, %v704
        %v856 = vmul.f32 %v852, %v705
        %v857 = vsel %vm517, %v855, 0.0
        %v858 = vrot.slane %v857, 4
        %v859 = vadd.f32 %v857, %v858
        %v860 = vrot.slane %v859, 2
        %v861 = vadd.f32 %v859, %v860
        %v862 = vrot.slane %v861, 1
        %v863 = vadd.f32 %v861, %v862
        %v864 = vsel %vm517, %v856, 0.0
        %v865 = vrot.slane %v864, 4
        %v866 = vadd.f32 %v864, %v865
        %v867 = vrot.slane %v866, 2
        %v868 = vadd.f32 %v866, %v867
        %v869 = vrot.slane %v868, 1
        %v870 = vadd.f32 %v868, %v869
        %v871 = vlaneseq
        %v872 = vshrl.u32 %v871, 7
        %v873 = vsub.s32 2, %v872
        %v874 = vrot.slane %v497, %v873
        %vm877 = vcmask 1041409
        %v878 = vsel %vm877, %v870, %v863
        %v879 = vsel %vm517, %v878, 0
        %881 = vmatprep.subr.mxu0 0.0
        %882 = vmatpush1.msra.mxu0 %v493
        %883 = vmatprep.subr.mxu0 0.0
        %884 = vmatpush1.msra.mxu0 %v494
        %885 = vmatprep.subr.mxu0 0.0
        %886 = vmatpush1.msra.mxu0 %v495
        %887 = vmatprep.subr.mxu0 0.0
        %888 = vmatpush1.msra.mxu0 %v496
        %889 = vmatprep.subr.mxu0 0.0
        %890 = vmatpush1.msra.mxu0 0.0
        %891 = vmatprep.subr.mxu0 0.0
        %892 = vmatpush1.msra.mxu0 0.0
        %893 = vmatprep.subr.mxu0 0.0
        %894 = vmatpush1.msra.mxu0 0.0
        %895 = vmatprep.subr.mxu0 0.0
        %896 = vmatpush1.msra.mxu0 0.0
        %897 = vmatprep.subr.mxu0 0.0
        %898 = vmatpush1.msra.mxu0 0.0
        %899 = vmatprep.subr.mxu0 0.0
        %900 = vmatpush1.msra.mxu0 0.0
        %901 = vmatprep.subr.mxu0 0.0
        %902 = vmatpush1.msra.mxu0 0.0
        %903 = vmatprep.subr.mxu0 0.0
        %904 = vmatpush1.msra.mxu0 0.0
        %905 = vmatprep.subr.mxu0 0.0
        %906 = vmatpush1.msra.mxu0 0.0
        %907 = vmatprep.subr.mxu0 0.0
        %908 = vmatpush1.msra.mxu0 0.0
        %909 = vmatprep.subr.mxu0 0.0
        %910 = vmatpush1.msra.mxu0 0.0
        %911 = vmatprep.subr.mxu0 0.0
        %912 = vmatpush1.msra.mxu0 0.0
        %913 = vmatprep.subr.mxu0 0.0
        %914 = vmatpush1.msra.mxu0 0.0
        %915 = vmatprep.subr.mxu0 0.0
        %916 = vmatpush1.msra.mxu0 0.0
        %917 = vmatprep.subr.mxu0 0.0
        %918 = vmatpush1.msra.mxu0 0.0
        %919 = vmatprep.subr.mxu0 0.0
        %920 = vmatpush1.msra.mxu0 0.0
        %921 = vmatprep.subr.mxu0 0.0
        %922 = vmatpush1.msra.mxu0 0.0
        %923 = vmatprep.subr.mxu0 0.0
        %924 = vmatpush1.msra.mxu0 0.0
        %925 = vmatprep.subr.mxu0 0.0
        %926 = vmatpush1.msra.mxu0 0.0
        %927 = vmatprep.subr.mxu0 0.0
        %928 = vmatpush1.msra.mxu0 0.0
        %929 = vmatprep.subr.mxu0 0.0
        %930 = vmatpush1.msra.mxu0 0.0
        %931 = vmatprep.subr.mxu0 0.0
        %932 = vmatpush1.msra.mxu0 0.0
        %933 = vmatprep.subr.mxu0 0.0
        %934 = vmatpush1.msra.mxu0 0.0
        %935 = vmatprep.subr.mxu0 0.0
        %936 = vmatpush1.msra.mxu0 0.0
        %937 = vmatprep.subr.mxu0 0.0
        %938 = vmatpush1.msra.mxu0 0.0
        %939 = vmatprep.subr.mxu0 0.0
        %940 = vmatpush1.msra.mxu0 0.0
        %941 = vmatprep.subr.mxu0 0.0
        %942 = vmatpush1.msra.mxu0 0.0
        %943 = vmatprep.subr.mxu0 0.0
        %944 = vmatpush1.msra.mxu0 0.0
        %945 = vmatprep.mubr.f32.mxu0 0.0
        %946 = vmatmul.mubr.f32.gmra.mrb[0].mxu0 %v879
        %v947 = vpop.f32.mrb[0].mxu0
        %v948 = vadd.f32 %v874, %v947
        %v949 = vpop.f32.mrb[0].mxu0
        %950 = vdwg.mxu0
        %v953 = vunpack.c.l.s4 1966171168
        %v954 = vunpack.c.0.s8 %v953
        %v955 = vlaneseq
        %v956 = vshrl.u32 %v955, 7
        %v957 = vsub.s32 %v954, %v956
        %v958 = vrot.slane %v948, %v957
        %v959 = vcombine.high %v958, %v958
        %v961 = vunpack.c.l.s4 1966171168
        %v962 = vunpack.c.0.s8 %v961
        %v963 = vlaneseq
        %v964 = vshrl.u32 %v963, 7
        %v965 = vsub.s32 %v962, %v964
        %v966 = vrot.slane %v958, %v965
        %v968 = vunpack.c.l.s4 1966171168
        %v969 = vunpack.c.0.s8 %v968
        %v970 = vlaneseq
        %v971 = vshrl.u32 %v970, 7
        %v972 = vsub.s32 %v969, %v971
        %v973 = vrot.slane %v959, %v972
        %v974 = vlaneseq
        %v975 = vshrl.u32 %v974, 7
        %v976 = vsub.s32 0, %v975
        %v977 = vrot.slane %v966, %v976
        %v978 = vlaneseq
        %v979 = vshrl.u32 %v978, 7
        %v980 = vsub.s32 0, %v979
        %v981 = vrot.slane %v973, %v980
        %v984 = vadd.f32 %v507, %v977
        %v985 = vadd.f32 %v508, %v981
        %986 = vst.msk [vmem:[#allocation2] sm:$0xff] %vm517, %v984
        %987 = vst.msk [vmem:[#allocation2 + $0x8] sm:$0xff] %vm517, %v985
        %p988 = scmp.eq.s32.totalorder %s31, 1
        // Predicated region
        $region73: #{tpu_custom_call.1} parent=47 // pred_check
          %p989 = pneg %p988
        $region74: #{tpu_custom_call.1} parent=47 // pred_check_branch
          %991 = sbr.rel (%p989) target = $region76
        $region75: #{tpu_custom_call.1} parent=47 // pred_region
          %v992 = vld [vmem:[#allocation2] sm:$0xff]
          %v993 = vld [vmem:[#allocation2 + $0x8] sm:$0xff]
          %v994 = vsel %vm517, %v992, 0.0
          %v995 = vrot.slane %v994, 4
          %v996 = vadd.f32 %v994, %v995
          %v997 = vrot.slane %v996, 2
          %v998 = vadd.f32 %v996, %v997
          %v999 = vrot.slane %v998, 1
          %v1000 = vadd.f32 %v998, %v999
          %v1001 = vsel %vm517, %v993, 0.0
          %v1002 = vrot.slane %v1001, 4
          %v1003 = vadd.f32 %v1001, %v1002
          %v1004 = vrot.slane %v1003, 2
          %v1005 = vadd.f32 %v1003, %v1004
          %v1006 = vrot.slane %v1005, 1
          %v1007 = vadd.f32 %v1005, %v1006
          %v1010 = vsel %vm877, %v1007, %v1000
          %vm1012 = vcmask 254976
          %1013 = vst.msk [vmem:[#allocation12] sm:$0x3] %vm1012, %v1010
        $region76: #{tpu_custom_call.1} parent=47 // pred_fallthru
          _
        // Predicated region
        $region77: #{tpu_custom_call.1} parent=47 // pred_check
          %p1014 = pneg %p240
        $region78: #{tpu_custom_call.1} parent=47 // pred_check_branch
          %1016 = sbr.rel (%p1014) target = $region80
        $region79: #{tpu_custom_call.1} parent=47 // pred_region
          %s1018 = ssub.s32 32, 32
          %1019 = vsyncadd [#allocation5], %s1018
          %s1020 = smul.addr %s30, 32
          %s1021 = scalar_lea.hbm %s7, %s1020
          %s1023 = sshll.u32 [#allocation12], 4
          %s1024 = int_to_ptr.vmem [resolvable:$true] %s1023
          %1026 = dma.vmem_to_hbm [thread:$0]  %s1024, 32, %s1021, [#allocation5]
        $region80: #{tpu_custom_call.1} parent=47 // pred_fallthru
          _
        // Predicated region
        $region81: #{tpu_custom_call.1} parent=47 // pred_check
          %p1027 = pneg %p240
        $region82: #{tpu_custom_call.1} parent=47 // pred_check_branch
          %1029 = sbr.rel (%p1027) target = $region84
        $region83: #{tpu_custom_call.1} parent=47 // pred_region
          %1030 = dma.done [#allocation5], 32
        $region84: #{tpu_custom_call.1} parent=47 // pred_fallthru
          _
      $region48: #{tpu_custom_call.1} parent=5 // pred_fallthru
        _
      %p1031 = scmp.le.s32.totalorder 2, %s21
      // Predicated region
      $region85: #{tpu_custom_call.1} parent=5 // pred_check
        %p1032 = pneg %p1031
      $region86: #{tpu_custom_call.1} parent=5 // pred_check_branch
        %1034 = sbr.rel (%p1032) target = $region88
      $region87: #{tpu_custom_call.1} parent=5 // pred_region
        %s1035 = ssub.s32 %s21, 2
      $region88: #{tpu_custom_call.1} parent=5 // pred_fallthru
        _
    $region6: #{tpu_custom_call.1} parent=1 // loop_footer
      %s25 = sadd.s32 1, %s21
    $region7: #{tpu_custom_call.1} parent=1 // loop_footer_branch
      %20 = sbr.rel target = $region3
    $region8: #{tpu_custom_call.1} parent=1 // loop_exit
      _
    %1036 = vsyncpa [#allocation4], 1
    %s1037 = scalar_lea.sflag [#allocation4], 1
    %1038 = vsyncpa %s1037, 1
    %1039 = vsyncpa [#allocation7], 1
    %s1040 = scalar_lea.sflag [#allocation7], 1
    %1041 = vsyncpa %s1040, 1
    %1042 = vsyncpa [#allocation10], 1
    %s1043 = scalar_lea.sflag [#allocation10], 1
    %1044 = vsyncpa %s1043, 1
    %1045 = vsyncpa [#allocation5], 1
    %s1046 = scalar_lea.sflag [#allocation5], 1
    %1047 = vsyncpa %s1046, 1

</llo_original>
